<compile_context>
chip_gen: v5e
topology: v5e:2x2
jax: 0.10.0
libtpu: 0.0.40
codegen_flags: <defaults>
</compile_context>

<pallas_src>
import functools

import jax
import jax.numpy as jnp
from jax.experimental import pallas as pl
from jax.experimental.pallas import tpu as pltpu


def _round_up(x, m):
    return ((x + m - 1) // m) * m


def _vmem_policy():
    """Returns (working budget bytes, scoped-vmem request cap bytes) per TPU generation."""
    vmem_cap = 64 * 1024 * 1024
    try:
        info = pltpu.get_tpu_info()
        vmem_cap = int(getattr(info, "vmem_capacity_bytes", vmem_cap))
    except Exception:
        pass  # conservative default: treat as a 64 MiB (v7x-class) part
    if vmem_cap >= 96 * 1024 * 1024:
        # v5e / v6e: 128 MiB physical VMEM -> be aggressive.
        return 48 * 1024 * 1024, 96 * 1024 * 1024
    # v7x-class: 64 MiB per TensorCore -> keep several MiB of compiler headroom.
    return 32 * 1024 * 1024, 56 * 1024 * 1024


def _maxout_kernel_fused(x_ref, w_ref, b_ref, o_ref, *, maxout_k, cout_pad, compute_dtype):
    """Single-reduction-step path: grid = (batch tiles,).  No accumulator scratch."""
    x = x_ref[...]
    w = w_ref[...]
    if compute_dtype is not None:
        x = x.astype(compute_dtype)   # no-op if x is already bf16
        w = w.astype(compute_dtype)
    y = jnp.dot(x, w, preferred_element_type=jnp.float32)   # (block_b, K*cout_pad)
    y = y + b_ref[...].astype(jnp.float32)
    # Running max over K lane-aligned slabs (cout_pad is a multiple of 128).
    m = y[:, 0:cout_pad]
    for k in range(1, maxout_k):
        lo = k * cout_pad
        m = jnp.maximum(m, y[:, lo:lo + cout_pad])
    o_ref[...] = m.astype(o_ref.dtype)


def _maxout_kernel_acc(x_ref, w_ref, b_ref, o_ref, acc_ref, *, maxout_k, cout_pad, compute_dtype):
    """Cin-streaming path: grid = (batch tiles, Cin tiles).  acc_ref: f32 (block_b, K*cout_pad)."""
    k_step = pl.program_id(1)

    @pl.when(k_step == 0)
    def _init():
        # Bias folded into the accumulator init (free: init writes the full tile anyway).
        acc_ref[...] = jnp.broadcast_to(b_ref[...].astype(jnp.float32), acc_ref.shape)

    x = x_ref[...]
    w = w_ref[...]
    if compute_dtype is not None:
        x = x.astype(compute_dtype)
        w = w.astype(compute_dtype)
    acc_ref[...] += jnp.dot(x, w, preferred_element_type=jnp.float32)

    @pl.when(k_step == pl.num_programs(1) - 1)
    def _finalize():
        # Pure max/select epilogue over lane-aligned slabs (bias already in acc).
        m = acc_ref[:, 0:cout_pad]
        for k in range(1, maxout_k):
            lo = k * cout_pad
            m = jnp.maximum(m, acc_ref[:, lo:lo + cout_pad])
        o_ref[...] = m.astype(o_ref.dtype)


def maxout_linear(x, w_t, b, *, maxout_k, out_channels,
                  block_b=None, block_k=None, use_bf16=True, vmem_budget_bytes=None):
    """x: (B, Cin) [f32 or bf16]; w_t: (Cin, maxout_k*out_channels); b: (1, maxout_k*out_channels)."""
    B, Cin = x.shape
    kcout = maxout_k * out_channels
    assert w_t.shape == (Cin, kcout), w_t.shape
    assert b.shape == (1, kcout), b.shape

    budget, limit_cap = _vmem_policy()
    if vmem_budget_bytes is not None:
        budget = min(int(vmem_budget_bytes), limit_cap)

    compute_dtype = jnp.bfloat16 if use_bf16 else None
    w_used = w_t.astype(jnp.bfloat16) if use_bf16 else w_t

    # ---- Per-slab lane padding of out_channels to a multiple of 128 so the maxout slab
    #      slices are vreg-aligned and the output store is lane-dense (unmasked vst).
    cout_pad = _round_up(out_channels, 128)
    kcout_pad = maxout_k * cout_pad
    if cout_pad != out_channels:
        pad_c = cout_pad - out_channels
        w_used = jnp.pad(w_used.reshape(Cin, maxout_k, out_channels),
                         ((0, 0), (0, 0), (0, pad_c))).reshape(Cin, kcout_pad)
        b_used = jnp.pad(b.reshape(1, maxout_k, out_channels),
                         ((0, 0), (0, 0), (0, pad_c))).reshape(1, kcout_pad)
    else:
        b_used = b

    x_bytes = jnp.dtype(x.dtype).itemsize
    w_bytes = jnp.dtype(w_used.dtype).itemsize
    b_bytes = jnp.dtype(b_used.dtype).itemsize
    out_bytes = x_bytes

    # ---- Cin (reduction) tiling: keep the whole weight resident (invariant block index
    #      -> DMA'd once) whenever its double-buffered footprint fits comfortably in the
    #      budget; otherwise stream Cin in 256-aligned chunks (fills the wider v6e/v7x MXU).
    if block_k is None:
        if 2 * Cin * kcout_pad * w_bytes <= (3 * budget) // 4:
            block_k = Cin
        else:
            block_k = 512
    if block_k >= Cin:
        block_k = Cin
        cin_pad = Cin
    else:
        assert block_k % 128 == 0, "Cin tile must be a multiple of 128"
        cin_pad = _round_up(Cin, block_k)
    fused = (block_k == Cin)
    # TODO(synk): a very wide K*Cout with tiny Cin would need an output-column grid axis;
    # this kernel keeps the full (padded) K*Cout extent resident per step.

    # ---- Batch tile: largest candidate whose working set fits the budget, preferring
    #      >=2 batch tiles (pipelining + 2-TC 'parallel' split) when the batch allows.
    b_min = _round_up(B, 8)
    want_tiles = 2 if b_min >= 16 else 1
    w_foot = 2 * block_k * kcout_pad * w_bytes + 2 * kcout_pad * b_bytes

    def _foot(bb):
        return (w_foot
                + 2 * bb * block_k * x_bytes        # x tile, double-buffered
                + 2 * bb * cout_pad * out_bytes     # out tile, double-buffered
                + bb * kcout_pad * 4)               # f32 acc scratch / matmul temporary

    if block_b is None:
        block_b = 8
        for cand in (2048, 1024, 512, 256, 128, 64, 32, 16, 8):
            if cand * want_tiles > b_min:
                continue
            if _foot(cand) <= budget:
                block_b = cand
                break
    block_b = _round_up(min(block_b, b_min), 8)
    b_pad = _round_up(B, block_b)

    footprint = _foot(block_b)
    vmem_limit = int(min(max(32 * 1024 * 1024, 2 * footprint), limit_cap))

    # ---- Zero-pad batch / Cin if needed (zeros contribute nothing to the matmul;
    #      padded output rows/cols are sliced off below).
    x_p = x
    if b_pad != B or cin_pad != Cin:
        x_p = jnp.pad(x, ((0, b_pad - B), (0, cin_pad - Cin)))
    w_p = w_used
    if cin_pad != Cin:
        w_p = jnp.pad(w_used, ((0, cin_pad - Cin), (0, 0)))

    n_b_tiles = b_pad // block_b
    w_hbm_reads = 1 if fused else n_b_tiles   # Cin-tiled regime re-streams the weight per batch tile
    cost = pl.CostEstimate(
        flops=2 * b_pad * cin_pad * kcout_pad,
        transcendentals=0,
        bytes_accessed=(b_pad * cin_pad * x_bytes
                        + w_hbm_reads * cin_pad * kcout_pad * w_bytes
                        + kcout_pad * b_bytes
                        + b_pad * cout_pad * out_bytes),
    )

    if fused:
        kernel = functools.partial(_maxout_kernel_fused, maxout_k=maxout_k,
                                   cout_pad=cout_pad, compute_dtype=compute_dtype)
        out = pl.pallas_call(
            kernel,
            out_shape=jax.ShapeDtypeStruct((b_pad, cout_pad), x.dtype),
            grid_spec=pltpu.PrefetchScalarGridSpec(
                num_scalar_prefetch=0,
                grid=(n_b_tiles,),
                in_specs=[
                    pl.BlockSpec((block_b, Cin), lambda i: (i, 0)),
                    pl.BlockSpec((Cin, kcout_pad), lambda i: (0, 0)),   # invariant: DMA'd once
                    pl.BlockSpec((1, kcout_pad), lambda i: (0, 0)),     # invariant
                ],
                out_specs=pl.BlockSpec((block_b, cout_pad), lambda i: (i, 0)),
                scratch_shapes=[],
            ),
            compiler_params=pltpu.CompilerParams(
                dimension_semantics=("parallel",),
                vmem_limit_bytes=vmem_limit,
            ),
            cost_estimate=cost,
        )(x_p, w_p, b_used)
    else:
        kernel = functools.partial(_maxout_kernel_acc, maxout_k=maxout_k,
                                   cout_pad=cout_pad, compute_dtype=compute_dtype)
        out = pl.pallas_call(
            kernel,
            out_shape=jax.ShapeDtypeStruct((b_pad, cout_pad), x.dtype),
            grid_spec=pltpu.PrefetchScalarGridSpec(
                num_scalar_prefetch=0,
                grid=(n_b_tiles, cin_pad // block_k),
                in_specs=[
                    pl.BlockSpec((block_b, block_k), lambda i, k: (i, k)),
                    pl.BlockSpec((block_k, kcout_pad), lambda i, k: (k, 0)),
                    pl.BlockSpec((1, kcout_pad), lambda i, k: (0, 0)),
                ],
                out_specs=pl.BlockSpec((block_b, cout_pad), lambda i, k: (i, 0)),
                scratch_shapes=[pltpu.VMEM((block_b, kcout_pad), jnp.float32)],
            ),
            compiler_params=pltpu.CompilerParams(
                dimension_semantics=("parallel", "arbitrary"),
                vmem_limit_bytes=vmem_limit,
            ),
            cost_estimate=cost,
        )(x_p, w_p, b_used)

    if b_pad != B or cout_pad != out_channels:
        out = out[:B, :out_channels]
    return out


def maxout_linear_ref(x, w_t, b, *, maxout_k, out_channels, cast_bf16=False):
    """Pure-JAX reference matching the PyTorch module (optionally with bf16-cast inputs)."""
    xf = x.astype(jnp.float32)
    wf = w_t.astype(jnp.float32)
    if cast_bf16:
        xf = xf.astype(jnp.bfloat16).astype(jnp.float32)
        wf = wf.astype(jnp.bfloat16).astype(jnp.float32)
    y = jnp.dot(xf, wf, precision=jax.lax.Precision.HIGHEST) + b.astype(jnp.float32)
    y = y.reshape(*y.shape[:-1], maxout_k, out_channels)
    return jnp.max(y, axis=-2).astype(x.dtype)


def _check(x, w_t, b, *, maxout_k, out_channels, **kw):
    out = maxout_linear(x, w_t, b, maxout_k=maxout_k, out_channels=out_channels, **kw)
    out = jax.block_until_ready(out)
    assert out.shape == (x.shape[0], out_channels)
    # Tight check against a reference with the same bf16-input / f32-accumulate math.
    ref_bf16 = maxout_linear_ref(x, w_t, b, maxout_k=maxout_k,
                                 out_channels=out_channels, cast_bf16=True)
    assert jnp.allclose(out, ref_bf16, atol=1e-3, rtol=1e-3), "mismatch vs bf16-input reference"
    # Looser check against the exact-f32 PyTorch-equivalent reference.
    ref_f32 = maxout_linear_ref(x, w_t, b, maxout_k=maxout_k,
                                out_channels=out_channels, cast_bf16=False)
    assert jnp.allclose(out, ref_f32, atol=3e-2, rtol=3e-2), "mismatch vs f32 reference"
    return out


def _make_inputs(key, batch, in_channels, out_channels, maxout_k):
    kx, kw, kb = jax.random.split(key, 3)
    # Mimic nn.Linear's U(-1/sqrt(fan_in), 1/sqrt(fan_in)) init; weight is kept
    # pre-transposed to (in_features, K*out_features) so the kernel does x @ W.
    bound = 1.0 / (in_channels ** 0.5)
    w_t = jax.random.uniform(kw, (in_channels, maxout_k * out_channels),
                             minval=-bound, maxval=bound, dtype=jnp.float32)
    b = jax.random.uniform(kb, (1, maxout_k * out_channels),
                           minval=-bound, maxval=bound, dtype=jnp.float32)
    x = jax.random.normal(kx, (batch, in_channels), dtype=jnp.float32)
    return x, w_t, b


if __name__ == "__main__":
    key = jax.random.PRNGKey(0)
    k0, k1, k2 = jax.random.split(key, 3)

    # 1) Small, module-consistent shapes; exercises per-slab Cout padding (32 -> 128)
    #    and the fused (single-reduction-step) path.
    x, w_t, b = _make_inputs(k0, batch=8, in_channels=32, out_channels=32, maxout_k=4)
    _check(x, w_t, b, maxout_k=4, out_channels=32)

    # 2) Larger shape: batch tiling + padding (B not a multiple of the tile), lane-dense Cout.
    x2, w2, b2 = _make_inputs(k1, batch=1000, in_channels=192, out_channels=128, maxout_k=3)
    _check(x2, w2, b2, maxout_k=3, out_channels=128)

    # 2b) Same shapes with bf16 activations (halved x DMA bytes; bf16 output).
    xb = x2.astype(jnp.bfloat16)
    outb = jax.block_until_ready(maxout_linear(xb, w2, b2, maxout_k=3, out_channels=128))
    refb = maxout_linear_ref(x2, w2, b2, maxout_k=3, out_channels=128,
                             cast_bf16=True).astype(jnp.bfloat16)
    assert outb.shape == (1000, 128)
    assert jnp.allclose(outb.astype(jnp.float32), refb.astype(jnp.float32),
                        atol=5e-2, rtol=5e-2), "mismatch on bf16-activation path"

    # 3) Force the Cin-streaming path (block_k < Cin): accumulator + bias-folded init +
    #    per-slab padding (96 -> 128).
    x3, w3, b3 = _make_inputs(k2, batch=64, in_channels=256, out_channels=96, maxout_k=2)
    _check(x3, w3, b3, maxout_k=2, out_channels=96, block_k=128)

    print("KERNEL_OK")
</pallas_src>

<mosaic_0001>
module attributes {stable_mosaic.version = 11 : i64} {
  func.func @_maxout_kernel_fused(%arg0: i32, %arg1: memref<8x32xf32, #tpu.memory_space<vmem>>, %arg2: memref<32x512xbf16, #tpu.memory_space<vmem>>, %arg3: memref<1x512xf32, #tpu.memory_space<vmem>>, %arg4: memref<8x128xf32, #tpu.memory_space<vmem>>) attributes {dimension_semantics = [#tpu.dimension_semantics<parallel>], iteration_bounds = array<i64: 1>, scalar_prefetch = 0 : i64, scratch_operands = 0 : i64, tpu.core_type = #tpu.core_type<tc>, window_params = [{transform_indices = @transform_0, window_bounds = array<i64: 8, 32>}, {pipeline_mode = #tpu.pipeline_mode<synchronous>, transform_indices = @transform_1, window_bounds = array<i64: 32, 512>}, {pipeline_mode = #tpu.pipeline_mode<synchronous>, transform_indices = @transform_2, window_bounds = array<i64: 1, 512>}, {transform_indices = @transform_3, window_bounds = array<i64: 8, 128>}]} {
    %c0 = arith.constant 0 : index
    %c0_0 = arith.constant 0 : index
    %0 = vector.load %arg1[%c0, %c0_0] : memref<8x32xf32, #tpu.memory_space<vmem>>, vector<8x32xf32>
    %c0_1 = arith.constant 0 : index
    %c0_2 = arith.constant 0 : index
    %1 = vector.load %arg2[%c0_1, %c0_2] : memref<32x512xbf16, #tpu.memory_space<vmem>>, vector<32x512xbf16>
    %2 = arith.truncf %0 : vector<8x32xf32> to vector<8x32xbf16>
    %cst = arith.constant dense<0.000000e+00> : vector<8x512xf32>
    %3 = tpu.matmul %2, %1, %cst {dimension_numbers = #tpu.dot_dimension_numbers<[1], [0], [0], [1], [0, 0, 1, 1], [], []>} : vector<8x32xbf16>, vector<32x512xbf16>, vector<8x512xf32> -> vector<8x512xf32>
    %c0_3 = arith.constant 0 : index
    %c0_4 = arith.constant 0 : index
    %4 = vector.load %arg3[%c0_3, %c0_4] : memref<1x512xf32, #tpu.memory_space<vmem>>, vector<1x512xf32>
    %5 = vector.broadcast %4 : vector<1x512xf32> to vector<8x512xf32>
    %6 = arith.addf %3, %5 : vector<8x512xf32>
    %7 = vector.extract_strided_slice %6 {offsets = [0, 0], sizes = [8, 128], strides = [1, 1]} : vector<8x512xf32> to vector<8x128xf32>
    %8 = vector.extract_strided_slice %6 {offsets = [0, 128], sizes = [8, 128], strides = [1, 1]} : vector<8x512xf32> to vector<8x128xf32>
    %9 = arith.maximumf %7, %8 : vector<8x128xf32>
    %10 = vector.extract_strided_slice %6 {offsets = [0, 256], sizes = [8, 128], strides = [1, 1]} : vector<8x512xf32> to vector<8x128xf32>
    %11 = arith.maximumf %9, %10 : vector<8x128xf32>
    %12 = vector.extract_strided_slice %6 {offsets = [0, 384], sizes = [8, 128], strides = [1, 1]} : vector<8x512xf32> to vector<8x128xf32>
    %13 = arith.maximumf %11, %12 : vector<8x128xf32>
    %c0_5 = arith.constant 0 : index
    %c0_6 = arith.constant 0 : index
    %14 = vector.load %arg4[%c0_5, %c0_6] : memref<8x128xf32, #tpu.memory_space<vmem>>, vector<8x128xf32>
    tpu.vector_store %arg4[%c0_5, %c0_6], %13 {strides = array<i32>} : memref<8x128xf32, #tpu.memory_space<vmem>>, vector<8x128xf32>,
    return
  }
  func.func @transform_0(%arg0: i32) -> (i32, i32) {
    %c0_i32 = arith.constant 0 : i32
    %c0_i32_0 = arith.constant 0 : i32
    return %arg0, %c0_i32 : i32, i32
  }
  func.func @transform_1(%arg0: i32) -> (i32, i32) {
    %c0_i32 = arith.constant 0 : i32
    %c0_i32_0 = arith.constant 0 : i32
    %c0_i32_1 = arith.constant 0 : i32
    return %c0_i32, %c0_i32_0 : i32, i32
  }
  func.func @transform_2(%arg0: i32) -> (i32, i32) {
    %c0_i32 = arith.constant 0 : i32
    %c0_i32_0 = arith.constant 0 : i32
    %c0_i32_1 = arith.constant 0 : i32
    return %c0_i32, %c0_i32_0 : i32, i32
  }
  func.func @transform_3(%arg0: i32) -> (i32, i32) {
    %c0_i32 = arith.constant 0 : i32
    %c0_i32_0 = arith.constant 0 : i32
    return %arg0, %c0_i32 : i32, i32
  }
}

</mosaic_0001>

<llo_original>
// kernel: tpu_custom_call.1
$region0: #{tpu_custom_call.1}
  #allocation0 [shape = 'u32[]', space=smem, size = 0x4, offset = 0x4, fixed_abs, tag = 'smem constant byte address 0x4 - core index']
  #allocation1 [shape = 'u32[72,128]{1,0:T(1,128)}', space=vmem, size = 0x9000, scoped, tag = 'internal scratch']
  %s0 = inlined_call_operand.hbm [shape: f32[8,32], index: 0, kind: input, shape index: {}]
  %s1 = inlined_call_operand.hbm [shape: bf16[32,512], index: 1, kind: input, shape index: {}]
  %s2 = inlined_call_operand.hbm [shape: f32[1,512], index: 2, kind: input, shape index: {}]
  %s3 = inlined_call_operand.hbm [shape: f32[8,128], index: 3, kind: output, shape index: {}]
  %s4 = sld [smem:[#allocation0]]
  $region34: #{tpu_custom_call.1} parent=0
    _
  %s6 = ssub.s32 1, %s4
  %s7 = scalar_select 0, %s6, %s4
  $region1: #{tpu_custom_call.1} parent=0
    #allocation2 [shape = 'u8[4096]{0}', space=vmem, size = 0x1000, scoped, tag = 'input window, operand 0, single buffered']
    #allocation3 [shape = 's32[1]{0}', space=sflag, size = 0x4, scoped, tag = 'scoped memory for tpu_custom_call.1']
    #allocation4 [shape = 's32[1]{0}', space=sflag, size = 0x4, scoped, tag = 'scoped memory for tpu_custom_call.1']
    #allocation5 [shape = 'u8[32768]{0}', space=vmem, size = 0x8000, scoped, tag = 'input window, operand 1, single buffered']
    #allocation6 [shape = 's32[1]{0}', space=sflag, size = 0x4, scoped, tag = 'scoped memory for tpu_custom_call.1']
    #allocation7 [shape = 'u8[2048]{0}', space=vmem, size = 0x800, scoped, tag = 'input window, operand 2, single buffered']
    #allocation8 [shape = 'u8[4096]{0}', space=vmem, size = 0x1000, scoped, tag = 'output window, operand 0, single buffered']
    %8 = vsyncpa [#allocation3], 0
    %9 = vsyncpa [#allocation6], 0
    %10 = vsyncpa [#allocation4], 0
    // Predicated region
    $region2: #{tpu_custom_call.1} parent=1 // pred_check
      _
    $region3: #{tpu_custom_call.1} parent=1 // pred_check_branch
      %12 = sbr.rel (0) target = $region5
    $region4: #{tpu_custom_call.1} parent=1 // pred_region
      %14 = vsyncadd [#allocation3], 0
      %s16 = sshll.u32 %s0, 4
      %s17 = int_to_ptr.hbm [resolvable:$true] %s16
      %s18 = sshll.u32 [#allocation2], 4
      %s19 = int_to_ptr.vmem [resolvable:$true] %s18
      %21 = dma.hbm_to_vmem [thread:$0]  %s17, 128, %s19, [#allocation3]
    $region5: #{tpu_custom_call.1} parent=1 // pred_fallthru
      _
    // Predicated region
    $region6: #{tpu_custom_call.1} parent=1 // pred_check
      _
    $region7: #{tpu_custom_call.1} parent=1 // pred_check_branch
      %23 = sbr.rel (0) target = $region9
    $region8: #{tpu_custom_call.1} parent=1 // pred_region
      %25 = vsyncadd [#allocation6], 0
      %s26 = sshll.u32 %s1, 4
      %s27 = int_to_ptr.hbm [resolvable:$true] %s26
      %s28 = sshll.u32 [#allocation5], 4
      %s29 = int_to_ptr.vmem [resolvable:$true] %s28
      %34 = dma.hbm_to_vmem [thread:$0]  %s27, 1024, %s29, [#allocation6], 256, 256, 16
    $region9: #{tpu_custom_call.1} parent=1 // pred_fallthru
      _
    // Predicated region
    $region10: #{tpu_custom_call.1} parent=1 // pred_check
      _
    $region11: #{tpu_custom_call.1} parent=1 // pred_check_branch
      %36 = sbr.rel (0) target = $region13
    $region12: #{tpu_custom_call.1} parent=1 // pred_region
      %38 = vsyncadd [#allocation6], 0
      %s40 = sshll.u32 %s2, 4
      %s41 = int_to_ptr.hbm [resolvable:$true] %s40
      %s42 = sshll.u32 [#allocation7], 4
      %s43 = int_to_ptr.vmem [resolvable:$true] %s42
      %45 = dma.hbm_to_vmem [thread:$0]  %s41, 64, %s43, [#allocation6]
    $region13: #{tpu_custom_call.1} parent=1 // pred_fallthru
      _
    // Predicated region
    $region14: #{tpu_custom_call.1} parent=1 // pred_check
      _
    $region15: #{tpu_custom_call.1} parent=1 // pred_check_branch
      %47 = sbr.rel (0) target = $region17
    $region16: #{tpu_custom_call.1} parent=1 // pred_region
      %49 = dma.done [#allocation3], 128
    $region17: #{tpu_custom_call.1} parent=1 // pred_fallthru
      _
    // Predicated region
    $region18: #{tpu_custom_call.1} parent=1 // pred_check
      _
    $region19: #{tpu_custom_call.1} parent=1 // pred_check_branch
      %51 = sbr.rel (0) target = $region21
    $region20: #{tpu_custom_call.1} parent=1 // pred_region
      %53 = dma.done [#allocation6], 1024
    $region21: #{tpu_custom_call.1} parent=1 // pred_fallthru
      _
    // Predicated region
    $region22: #{tpu_custom_call.1} parent=1 // pred_check
      _
    $region23: #{tpu_custom_call.1} parent=1 // pred_check_branch
      %55 = sbr.rel (0) target = $region25
    $region24: #{tpu_custom_call.1} parent=1 // pred_region
      %57 = dma.done [#allocation6], 64
    $region25: #{tpu_custom_call.1} parent=1 // pred_fallthru
      _
    %v59 = vld [vmem:[#allocation2] sm:$0xff]
    %v60 = vld [vmem:[#allocation5] sm:$0xff]
    %v61 = vld [vmem:[#allocation5 + $0x8] sm:$0xff]
    %v62 = vld [vmem:[#allocation5 + $0x10] sm:$0xff]
    %v63 = vld [vmem:[#allocation5 + $0x18] sm:$0xff]
    %v64 = vld [vmem:[#allocation5 + $0x20] sm:$0xff]
    %v65 = vld [vmem:[#allocation5 + $0x28] sm:$0xff]
    %v66 = vld [vmem:[#allocation5 + $0x30] sm:$0xff]
    %v67 = vld [vmem:[#allocation5 + $0x38] sm:$0xff]
    %v68 = vpack.c.bf16 %v59, %v59
    %v69 = vld [vmem:[#allocation7] sm:$0xf]
    %v71 = vperm.slane %v69, 0
    %v72 = vperm.slane %v69, 1
    %v73 = vperm.slane %v69, 2
    %v74 = vperm.slane %v69, 3
    %v87 = vunpack.c.l.b16 %v60
    %v88 = vunpack.c.h.b16 %v60
    %v89 = vunpack.c.l.b16 %v61
    %v90 = vunpack.c.h.b16 %v61
    %v91 = vunpack.c.l.b16 %v62
    %v92 = vunpack.c.h.b16 %v62
    %v93 = vunpack.c.l.b16 %v63
    %v94 = vunpack.c.h.b16 %v63
    %v95 = vunpack.c.l.b16 %v64
    %v96 = vunpack.c.h.b16 %v64
    %v97 = vunpack.c.l.b16 %v65
    %v98 = vunpack.c.h.b16 %v65
    %v99 = vunpack.c.l.b16 %v66
    %v100 = vunpack.c.h.b16 %v66
    %v101 = vunpack.c.l.b16 %v67
    %v102 = vunpack.c.h.b16 %v67
    %v103 = vpack.c.b16 %v91, %v87
    %v104 = vpack.c.b16 %v92, %v88
    %v105 = vpack.c.b16 %v93, %v89
    %v106 = vpack.c.b16 %v94, %v90
    %v107 = vpack.c.b16 %v99, %v95
    %v108 = vpack.c.b16 %v100, %v96
    %v109 = vpack.c.b16 %v101, %v97
    %v110 = vpack.c.b16 %v102, %v98
    %vm119 = vcmask 261120
    %v121 = vsel %vm119, %v68, 0
    %123 = vmatpush.bf16.msra.mxu0 0
    %124 = vmatpush.bf16.msra.mxu0 0
    %125 = vmatpush.bf16.msra.mxu0 0
    %126 = vmatpush.bf16.msra.mxu0 0
    %127 = vmatpush.bf16.msra.mxu0 0
    %128 = vmatpush.bf16.msra.mxu0 0
    %129 = vmatpush.bf16.msra.mxu0 %v107
    %130 = vmatpush.bf16.msra.mxu0 %v103
    %131 = vmatmul.bf16.gmra.mxu0 %v121
    %v132 = vpop.f32.mrf.mxu0
    %v133 = vadd.f32 %v71, %v132
    %v134 = vpop.f32.mrf.mxu0
    %135 = vdwg.mxu0
    %136 = vmatpush.bf16.msra.mxu0 0
    %137 = vmatpush.bf16.msra.mxu0 0
    %138 = vmatpush.bf16.msra.mxu0 0
    %139 = vmatpush.bf16.msra.mxu0 0
    %140 = vmatpush.bf16.msra.mxu0 0
    %141 = vmatpush.bf16.msra.mxu0 0
    %142 = vmatpush.bf16.msra.mxu0 %v108
    %143 = vmatpush.bf16.msra.mxu0 %v104
    %144 = vmatmul.bf16.gmra.mxu0 %v121
    %v145 = vpop.f32.mrf.mxu0
    %v146 = vadd.f32 %v72, %v145
    %v147 = vpop.f32.mrf.mxu0
    %148 = vdwg.mxu0
    %149 = vmatpush.bf16.msra.mxu0 0
    %150 = vmatpush.bf16.msra.mxu0 0
    %151 = vmatpush.bf16.msra.mxu0 0
    %152 = vmatpush.bf16.msra.mxu0 0
    %153 = vmatpush.bf16.msra.mxu0 0
    %154 = vmatpush.bf16.msra.mxu0 0
    %155 = vmatpush.bf16.msra.mxu0 %v109
    %156 = vmatpush.bf16.msra.mxu0 %v105
    %157 = vmatmul.bf16.gmra.mxu0 %v121
    %v158 = vpop.f32.mrf.mxu0
    %v159 = vadd.f32 %v73, %v158
    %v160 = vpop.f32.mrf.mxu0
    %161 = vdwg.mxu0
    %162 = vmatpush.bf16.msra.mxu0 0
    %163 = vmatpush.bf16.msra.mxu0 0
    %164 = vmatpush.bf16.msra.mxu0 0
    %165 = vmatpush.bf16.msra.mxu0 0
    %166 = vmatpush.bf16.msra.mxu0 0
    %167 = vmatpush.bf16.msra.mxu0 0
    %168 = vmatpush.bf16.msra.mxu0 %v110
    %169 = vmatpush.bf16.msra.mxu0 %v106
    %170 = vmatmul.bf16.gmra.mxu0 %v121
    %v171 = vpop.f32.mrf.mxu0
    %v172 = vadd.f32 %v74, %v171
    %v173 = vpop.f32.mrf.mxu0
    %174 = vdwg.mxu0
    %v175 = vmax.f32 %v133, %v146
    %v176 = vmax.f32 %v175, %v159
    %v177 = vmax.f32 %v176, %v172
    %178 = vst [vmem:[#allocation8] sm:$0xff] %v177
    // Predicated region
    $region26: #{tpu_custom_call.1} parent=1 // pred_check
      _
    $region27: #{tpu_custom_call.1} parent=1 // pred_check_branch
      %180 = sbr.rel (0) target = $region29
    $region28: #{tpu_custom_call.1} parent=1 // pred_region
      %182 = vsyncadd [#allocation4], 0
      %s184 = sshll.u32 [#allocation8], 4
      %s185 = int_to_ptr.vmem [resolvable:$true] %s184
      %s186 = sshll.u32 %s3, 4
      %s187 = int_to_ptr.hbm [resolvable:$true] %s186
      %189 = dma.vmem_to_hbm [thread:$0]  %s185, 128, %s187, [#allocation4]
    $region29: #{tpu_custom_call.1} parent=1 // pred_fallthru
      _
    // Predicated region
    $region30: #{tpu_custom_call.1} parent=1 // pred_check
      _
    $region31: #{tpu_custom_call.1} parent=1 // pred_check_branch
      %191 = sbr.rel (0) target = $region33
    $region32: #{tpu_custom_call.1} parent=1 // pred_region
      %193 = dma.done [#allocation4], 128
    $region33: #{tpu_custom_call.1} parent=1 // pred_fallthru
      _
    %194 = vsyncpa [#allocation3], 1
    %195 = vsyncpa [#allocation6], 1
    %196 = vsyncpa [#allocation4], 1

</llo_original>
